<compile_context>
chip_gen: v7x
topology: tpu7x:2x2x1
jax: 0.10.0
libtpu: 0.0.40
codegen_flags: <defaults>
</compile_context>

<pallas_src>
import math

import jax
import jax.numpy as jnp
from jax.experimental import pallas as pl
from jax.experimental.pallas import tpu as pltpu


# ----------------------------------------------------------------------------
# helpers
# ----------------------------------------------------------------------------

def _round_up(x, m):
    return (x + m - 1) // m * m


def _softplus(x):
    # Stable softplus == log1p(exp(x)) without overflow for large x.
    return jnp.maximum(x, 0.0) + jnp.log1p(jnp.exp(-jnp.abs(x)))


def _pad2(a, rows, cols):
    r, c = a.shape
    if r == rows and c == cols:
        return a
    return jnp.zeros((rows, cols), a.dtype).at[:r, :c].set(a)


# ----------------------------------------------------------------------------
# kernel: fused (x @ W_kn) + bias, (M, N, K) grid, resident f32 accumulator
# ----------------------------------------------------------------------------

def _linear_bias_kernel(x_ref, w_ref, b_ref, o_ref, acc_ref):
    k = pl.program_id(2)
    nk = pl.num_programs(2)

    # MXU-native NN matmul: (tm, tk) @ (tk, tn), f32 accumulation.
    partial = jnp.dot(x_ref[...], w_ref[...], preferred_element_type=jnp.float32)

    @pl.when(k == 0)
    def _():
        acc_ref[...] = partial          # direct store: no zero-fill + add pass

    @pl.when(k > 0)
    def _():
        acc_ref[...] += partial

    @pl.when(k == nk - 1)
    def _():
        # f32 bias add, cast, single writeback per (i, j) tile.
        o_ref[...] = (acc_ref[...] + b_ref[...]).astype(o_ref.dtype)


def _fused_linear(x2, w_kn, bias_row, out_dtype, *, tm=None, tn=512, tk=512):
    """x2: (B, K); w_kn: (K, N); bias_row: (1, N) f32. Returns (B, N)."""
    batch, K = x2.shape
    _, N = w_kn.shape

    # ---- tile sizes: (8, 128) granularity, biggest that comfortably fits ----
    tm = tm if tm is not None else min(_round_up(batch, 8), 256)
    tn_full = _round_up(N, 128)
    tk_full = _round_up(K, 128)
    tn = min(tn, tn_full)
    tk = min(tk, tk_full)

    # v7x megacore: if the batch fits in a single tile, keep >= 2 blocks along
    # the N ("parallel") axis so the second TensorCore has work. Harmless on
    # the single-core v5e/v6e.
    if _round_up(batch, tm) // tm == 1 and tn == tn_full and tn_full >= 256:
        tn = max(128, _round_up(tn_full // 2, 128))

    Mp = _round_up(batch, tm)
    Kp = _round_up(K, tk)
    Np = _round_up(N, tn)

    # Zero padding: padded K rows/cols contribute 0 to the contraction; padded
    # N columns are sliced off below.
    xp = _pad2(x2, Mp, Kp)
    wp = _pad2(w_kn, Kp, Np)
    bp = _pad2(bias_row, 1, Np)

    grid = (Mp // tm, Np // tn, Kp // tk)

    # Explicit VMEM budget (double-buffered tiles + f32 accumulator); capped at
    # 48 MiB, well under v7x's 64 MiB physical VMEM.
    def _nbytes(shape, dt):
        return math.prod(shape) * jnp.dtype(dt).itemsize

    est = (2 * _nbytes((tm, tk), xp.dtype)
           + 2 * _nbytes((tk, tn), wp.dtype)
           + 2 * _nbytes((1, tn), bp.dtype)
           + 2 * _nbytes((tm, tn), out_dtype)
           + _nbytes((tm, tn), jnp.float32))
    vmem_limit = int(min(max(2 * est, 32 * 1024 * 1024), 48 * 1024 * 1024))

    out = pl.pallas_call(
        _linear_bias_kernel,
        out_shape=jax.ShapeDtypeStruct((Mp, Np), out_dtype),
        grid_spec=pltpu.PrefetchScalarGridSpec(
            num_scalar_prefetch=0,
            grid=grid,
            in_specs=[
                pl.BlockSpec((tm, tk), lambda i, j, k: (i, k)),   # x      (M, K)
                pl.BlockSpec((tk, tn), lambda i, j, k: (k, j)),   # weight (K, N)
                pl.BlockSpec((1, tn), lambda i, j, k: (0, j)),    # bias   (1, N)
            ],
            out_specs=pl.BlockSpec((tm, tn), lambda i, j, k: (i, j)),
            scratch_shapes=[pltpu.VMEM((tm, tn), jnp.float32)],
        ),
        compiler_params=pltpu.CompilerParams(
            dimension_semantics=("parallel", "parallel", "arbitrary"),
            vmem_limit_bytes=vmem_limit),
    )(xp, wp, bp)

    return out[:batch, :N]


# ----------------------------------------------------------------------------
# wrapper: BayesianLinearLayer.forward
# ----------------------------------------------------------------------------

def bayesian_linear_forward(x, weight_mu, weight_rho, bias_mu, bias_rho,
                            *, sample=True, key=None,
                            matmul_dtype=jnp.bfloat16,
                            tm=None, tn=512, tk=512):
    """Pallas TPU implementation of BayesianLinearLayer.forward.

    x: (..., in_features); weight_*: (out_features, in_features);
    bias_*: (out_features,). Returns (..., out_features).

    Note: the reparameterization noise comes from `key` (jax.random), so it is
    deterministic per key but will not bit-match the PyTorch RNG.
    """
    lead_shape = x.shape[:-1]
    in_features = x.shape[-1]
    out_features = weight_mu.shape[0]
    x2 = x.reshape(-1, in_features)
    out_dtype = x.dtype

    if sample:
        if key is None:
            key = jax.random.PRNGKey(0)
        kw, kb = jax.random.split(key)
        w_sigma = _softplus(weight_rho.astype(jnp.float32))
        b_sigma = _softplus(bias_rho.astype(jnp.float32))
        w_eps = jax.random.normal(kw, weight_mu.shape, jnp.float32)
        b_eps = jax.random.normal(kb, bias_mu.shape, jnp.float32)
        weight = weight_mu.astype(jnp.float32) + w_sigma * w_eps
        bias = bias_mu.astype(jnp.float32) + b_sigma * b_eps
    else:
        weight = weight_mu.astype(jnp.float32)
        bias = bias_mu.astype(jnp.float32)

    # One-time pre-transpose to MXU-native (K, N) layout + bf16 cast so the
    # kernel streams a single half-width weight array and never transposes.
    w_kn = weight.T.astype(matmul_dtype)
    x_mm = x2.astype(matmul_dtype)
    bias_row = bias.reshape(1, out_features)       # stays f32, post-accumulation

    out = _fused_linear(x_mm, w_kn, bias_row, out_dtype, tm=tm, tn=tn, tk=tk)
    return out.reshape(*lead_shape, out_features)


def init_bayesian_linear_params(key, in_features, out_features, dtype=jnp.float32):
    """Matches BayesianLinearLayer.reset_parameters (deterministic given key)."""
    init_factor = math.sqrt(2.0 / in_features)
    weight_mu = init_factor * 0.1 * jax.random.normal(
        key, (out_features, in_features), dtype=dtype)
    weight_rho = jnp.full((out_features, in_features), -5.0, dtype=dtype)
    bias_mu = jnp.zeros((out_features,), dtype=dtype)
    bias_rho = jnp.full((out_features,), -5.0, dtype=dtype)
    return weight_mu, weight_rho, bias_mu, bias_rho


# ----------------------------------------------------------------------------
# self-test
# ----------------------------------------------------------------------------

if __name__ == "__main__":
    in_features = 256
    out_features = 192
    batch = 8

    root = jax.random.PRNGKey(0)
    k_param, k_x, k_s1, k_s2 = jax.random.split(root, 4)

    weight_mu, weight_rho, bias_mu, bias_rho = init_bayesian_linear_params(
        k_param, in_features, out_features)
    x = jax.random.normal(k_x, (batch, in_features), dtype=jnp.float32)

    # --- sample=False path: exact linear, checked against plain JAX (bf16
    #     MXU operands -> loose-ish tolerance). -----------------------------
    out_mean = bayesian_linear_forward(
        x, weight_mu, weight_rho, bias_mu, bias_rho, sample=False)
    jax.block_until_ready(out_mean)
    ref_mean = x @ weight_mu.T + bias_mu[None, :]
    assert out_mean.shape == (batch, out_features)
    assert jnp.allclose(out_mean, ref_mean, atol=2e-2, rtol=2e-2)

    # --- sample=True: same key -> same sample; must match a plain-JAX
    #     reference built with identical epsilon. ---------------------------
    out_s1 = bayesian_linear_forward(
        x, weight_mu, weight_rho, bias_mu, bias_rho, sample=True, key=k_s1)
    out_s1b = bayesian_linear_forward(
        x, weight_mu, weight_rho, bias_mu, bias_rho, sample=True, key=k_s1)
    out_s2 = bayesian_linear_forward(
        x, weight_mu, weight_rho, bias_mu, bias_rho, sample=True, key=k_s2)
    jax.block_until_ready((out_s1, out_s1b, out_s2))

    kw, kb = jax.random.split(k_s1)
    w_sig = jnp.log1p(jnp.exp(weight_rho))
    b_sig = jnp.log1p(jnp.exp(bias_rho))
    w_ref = weight_mu + w_sig * jax.random.normal(kw, weight_mu.shape, jnp.float32)
    b_ref = bias_mu + b_sig * jax.random.normal(kb, bias_mu.shape, jnp.float32)
    ref_s1 = x @ w_ref.T + b_ref[None, :]

    assert out_s1.shape == (batch, out_features)
    assert bool(jnp.all(jnp.isfinite(out_s1)))
    assert jnp.allclose(out_s1, ref_s1, atol=2e-2, rtol=2e-2)
    assert jnp.allclose(out_s1, out_s1b)          # same key  -> same sample
    assert not jnp.allclose(out_s1, out_s2)       # diff key  -> differs

    print("KERNEL_OK")
</pallas_src>

<mosaic_0001>
module attributes {stable_mosaic.version = 11 : i64} {
  func.func @_linear_bias_kernel(%arg0: i32, %arg1: i32, %arg2: i32, %arg3: memref<8x256xbf16, #tpu.memory_space<vmem>>, %arg4: memref<256x128xbf16, #tpu.memory_space<vmem>>, %arg5: memref<1x128xf32, #tpu.memory_space<vmem>>, %arg6: memref<8x128xf32, #tpu.memory_space<vmem>>, %arg7: memref<8x128xf32, #tpu.memory_space<vmem>>) attributes {dimension_semantics = [#tpu.dimension_semantics<parallel>, #tpu.dimension_semantics<parallel>, #tpu.dimension_semantics<arbitrary>], iteration_bounds = array<i64: 1, 2, 1>, scalar_prefetch = 0 : i64, scratch_operands = 1 : i64, tpu.core_type = #tpu.core_type<tc>, window_params = [{transform_indices = @transform_0, window_bounds = array<i64: 8, 256>}, {transform_indices = @transform_1, window_bounds = array<i64: 256, 128>}, {transform_indices = @transform_2, window_bounds = array<i64: 1, 128>}, {transform_indices = @transform_3, window_bounds = array<i64: 8, 128>}]} {
    %c0 = arith.constant 0 : index
    %c0_0 = arith.constant 0 : index
    %0 = vector.load %arg3[%c0, %c0_0] : memref<8x256xbf16, #tpu.memory_space<vmem>>, vector<8x256xbf16>
    %c0_1 = arith.constant 0 : index
    %c0_2 = arith.constant 0 : index
    %1 = vector.load %arg4[%c0_1, %c0_2] : memref<256x128xbf16, #tpu.memory_space<vmem>>, vector<256x128xbf16>
    %cst = arith.constant dense<0.000000e+00> : vector<8x128xf32>
    %2 = tpu.matmul %0, %1, %cst {dimension_numbers = #tpu.dot_dimension_numbers<[1], [0], [0], [1], [0, 0, 1, 1], [], []>} : vector<8x256xbf16>, vector<256x128xbf16>, vector<8x128xf32> -> vector<8x128xf32>
    %c0_i32 = arith.constant 0 : i32
    %3 = arith.cmpi eq, %arg2, %c0_i32 : i32
    %4 = arith.extui %3 : i1 to i32
    %c0_i32_3 = arith.constant 0 : i32
    %5 = arith.cmpi ne, %4, %c0_i32_3 : i32
    scf.if %5 {
      %c0_8 = arith.constant 0 : index
      %c0_9 = arith.constant 0 : index
      %12 = vector.load %arg7[%c0_8, %c0_9] : memref<8x128xf32, #tpu.memory_space<vmem>>, vector<8x128xf32>
      tpu.vector_store %arg7[%c0_8, %c0_9], %2 {strides = array<i32>} : memref<8x128xf32, #tpu.memory_space<vmem>>, vector<8x128xf32>,
    } else {
    }
    %c0_i32_4 = arith.constant 0 : i32
    %6 = arith.cmpi sgt, %arg2, %c0_i32_4 : i32
    %7 = arith.extui %6 : i1 to i32
    %c0_i32_5 = arith.constant 0 : i32
    %8 = arith.cmpi ne, %7, %c0_i32_5 : i32
    scf.if %8 {
      %c0_8 = arith.constant 0 : index
      %c0_9 = arith.constant 0 : index
      %12 = vector.load %arg7[%c0_8, %c0_9] : memref<8x128xf32, #tpu.memory_space<vmem>>, vector<8x128xf32>
      %13 = arith.addf %12, %2 : vector<8x128xf32>
      %c0_10 = arith.constant 0 : index
      %c0_11 = arith.constant 0 : index
      %14 = vector.load %arg7[%c0_10, %c0_11] : memref<8x128xf32, #tpu.memory_space<vmem>>, vector<8x128xf32>
      tpu.vector_store %arg7[%c0_10, %c0_11], %13 {strides = array<i32>} : memref<8x128xf32, #tpu.memory_space<vmem>>, vector<8x128xf32>,
    } else {
    }
    %c0_i32_6 = arith.constant 0 : i32
    %9 = arith.cmpi eq, %arg2, %c0_i32_6 : i32
    %10 = arith.extui %9 : i1 to i32
    %c0_i32_7 = arith.constant 0 : i32
    %11 = arith.cmpi ne, %10, %c0_i32_7 : i32
    scf.if %11 {
      %c0_8 = arith.constant 0 : index
      %c0_9 = arith.constant 0 : index
      %12 = vector.load %arg7[%c0_8, %c0_9] : memref<8x128xf32, #tpu.memory_space<vmem>>, vector<8x128xf32>
      %c0_10 = arith.constant 0 : index
      %c0_11 = arith.constant 0 : index
      %13 = vector.load %arg5[%c0_10, %c0_11] : memref<1x128xf32, #tpu.memory_space<vmem>>, vector<1x128xf32>
      %14 = vector.broadcast %13 : vector<1x128xf32> to vector<8x128xf32>
      %15 = arith.addf %12, %14 : vector<8x128xf32>
      %c0_12 = arith.constant 0 : index
      %c0_13 = arith.constant 0 : index
      %16 = vector.load %arg6[%c0_12, %c0_13] : memref<8x128xf32, #tpu.memory_space<vmem>>, vector<8x128xf32>
      tpu.vector_store %arg6[%c0_12, %c0_13], %15 {strides = array<i32>} : memref<8x128xf32, #tpu.memory_space<vmem>>, vector<8x128xf32>,
    } else {
    }
    return
  }
  func.func @transform_0(%arg0: i32, %arg1: i32, %arg2: i32) -> (i32, i32) {
    %c0_i32 = arith.constant 0 : i32
    return %arg0, %arg2 : i32, i32
  }
  func.func @transform_1(%arg0: i32, %arg1: i32, %arg2: i32) -> (i32, i32) {
    %c0_i32 = arith.constant 0 : i32
    return %arg2, %arg1 : i32, i32
  }
  func.func @transform_2(%arg0: i32, %arg1: i32, %arg2: i32) -> (i32, i32) {
    %c0_i32 = arith.constant 0 : i32
    %c0_i32_0 = arith.constant 0 : i32
    return %c0_i32, %arg1 : i32, i32
  }
  func.func @transform_3(%arg0: i32, %arg1: i32, %arg2: i32) -> (i32, i32) {
    %c0_i32 = arith.constant 0 : i32
    return %arg0, %arg1 : i32, i32
  }
}

</mosaic_0001>

<llo_original>
// kernel: tpu_custom_call.1
$region0: #{tpu_custom_call.1}
  #allocation0 [shape = 'u32[]', space=smem, size = 0x4, offset = 0x4, fixed_abs, tag = 'smem constant byte address 0x4 - core index']
  #allocation1 [shape = 'u32[144,128]{1,0:T(1,128)}', space=vmem, size = 0x12000, scoped, tag = 'internal scratch']
  #allocation2 [shape = 'f32[8,128]{1,0:T(8,128)}', space=vmem, size = 0x1000, scoped, tag = 'scratch operand']
  %s0 = inlined_call_operand.hbm [shape: bf16[8,256], index: 0, kind: input, shape index: {}]
  %s1 = inlined_call_operand.hbm [shape: bf16[256,256], index: 1, kind: input, shape index: {}]
  %s2 = inlined_call_operand.vmem [shape: f32[1,256], index: 2, kind: input, shape index: {}]
  %s3 = inlined_call_operand.hbm [shape: f32[8,256], index: 3, kind: output, shape index: {}]
  %s4 = sld [smem:[#allocation0]]
  $region65: #{tpu_custom_call.1} parent=0
    _
  %s6 = ssub.s32 1, %s4
  %s7 = scalar_select 0, %s6, %s4
  $region1: #{tpu_custom_call.1} parent=0
    #allocation3 [shape = 'u8[4096]{0}', space=vmem, size = 0x1000, scoped, tag = 'input window, operand 0, single buffered']
    #allocation4 [shape = 's32[2]{0}', space=sflag, size = 0x8, scoped, tag = 'scoped memory for tpu_custom_call.1']
    #allocation5 [shape = 's32[2]{0}', space=sflag, size = 0x8, scoped, tag = 'scoped memory for tpu_custom_call.1']
    #allocation6 [shape = 'u8[131072]{0}', space=vmem, size = 0x20000, scoped, tag = 'input window, operand 1']
    #allocation7 [shape = 's32[2]{0}', space=sflag, size = 0x8, scoped, tag = 'scoped memory for tpu_custom_call.1']
    #allocation8 [shape = 'u8[8192]{0}', space=vmem, size = 0x2000, scoped, tag = 'output window, operand 0']
    %8 = vsyncpa [#allocation4], 0
    %9 = vsyncpa [#allocation7], 0
    %s10 = scalar_lea.sflag [#allocation7], 1
    %11 = vsyncpa %s10, 0
    %12 = vsyncpa [#allocation5], 0
    %s13 = scalar_lea.sflag [#allocation5], 1
    %14 = vsyncpa %s13, 0
    loop: start=0, step=1, limit=4
    $region2: #{tpu_custom_call.1} parent=1 // loop_pre_header
      _
    $region3: #{tpu_custom_call.1} parent=1 // loop_header
      %s16 = sphi 0, %s20
      %p17 = scmp.ge.s32.totalorder %s16, 4
      %s23 = sphi 0, %s42
      %s24 = sphi 0, %s38
      %s25 = sphi 0, %s34
      %s26 = sphi 0, %s23
      %s27 = sphi 0, %s24
      %s28 = sphi 0, %s25
      %s29 = sphi 0, %s26
      %s30 = sphi 0, %s27
      %s31 = sphi 0, %s28
      %s47 = sphi 0, %s49
      %s50 = sphi 0, %s47
      %s51 = sphi 0, %s50
      %s67 = sphi 0, %s51
      %s75 = sphi 0, %s77
      %s78 = sphi 0, %s75
      %s79 = sphi 0, %s78
      %s95 = sphi 0, %s79
      %s101 = sphi 0, %s103
      %s104 = sphi 0, %s101
      %s105 = sphi 0, %s104
      %s121 = sphi 0, %s105
      %s129 = sphi 0, %s131
      %s132 = sphi 0, %s129
      %s133 = sphi 0, %s132
      %s149 = sphi 0, %s133
    $region4: #{tpu_custom_call.1} parent=1 // loop_header_branch
      %19 = sbr.rel (%p17) target = $region8
    $region5: #{tpu_custom_call.1} parent=1 // loop_body
      %s21 = ssub.s32 %s16, 1
      %s22 = ssub.s32 %s16, 2
      %s32 = sadd.s32 1, %s25
      %p33 = scmp.ge.s32.totalorder %s32, 1
      %s34 = scalar_select %p33, 0, %s32
      %s35 = sadd.s32 1, %s24
      %s36 = scalar_select %p33, %s35, %s24
      %p37 = scmp.ge.s32.totalorder %s36, 2
      %s38 = scalar_select %p37, 0, %s36
      %s39 = sadd.s32 1, %s23
      %s40 = scalar_select %p37, %s39, %s23
      %p41 = scmp.ge.s32.totalorder %s40, 1
      %s42 = scalar_select %p41, 0, %s40
      %s43 = ssub.s32 %s23, %s42
      %s44 = ssub.s32 %s25, %s34
      %s45 = sor.u32 %s43, %s44
      %p46 = scmp.eq.s32.totalorder %s45, 0
      %s48 = sadd.s32 %s47, 1
      %s49 = scalar_select %p46, %s47, %s48
      %p52 = pneg %p46
      %p53 = scmp.eq.s32.totalorder %s16, 1
      %p54 = por %p52, %p53
      %p55 = scmp.ne.s32.totalorder %s47, %s50
      %p56 = scmp.eq.s32.totalorder %s16, 0
      %p57 = por %p55, %p56
      %p58 = scmp.ne.s32.totalorder %s47, %s50
      %p59 = scmp.eq.s32.totalorder %s21, 1
      %p60 = por %p58, %p59
      %p61 = scmp.ne.s32.totalorder %s50, %s51
      %p62 = scmp.eq.s32.totalorder %s21, 0
      %p63 = por %p61, %p62
      %p64 = scmp.ne.s32.totalorder %s50, %s51
      %p65 = scmp.eq.s32.totalorder %s22, 1
      %p66 = por %p64, %p65
      %p68 = scmp.ne.s32.totalorder %s51, %s67
      %p69 = scmp.eq.s32.totalorder %s22, 0
      %p70 = por %p68, %p69
      %s71 = ssub.s32 %s25, %s34
      %s72 = ssub.s32 %s24, %s38
      %s73 = sor.u32 %s71, %s72
      %p74 = scmp.eq.s32.totalorder %s73, 0
      %s76 = sadd.s32 %s75, 1
      %s77 = scalar_select %p74, %s75, %s76
      %p80 = pneg %p74
      %p81 = scmp.eq.s32.totalorder %s16, 1
      %p82 = por %p80, %p81
      %p83 = scmp.ne.s32.totalorder %s75, %s78
      %p84 = scmp.eq.s32.totalorder %s16, 0
      %p85 = por %p83, %p84
      %p86 = scmp.ne.s32.totalorder %s75, %s78
      %p87 = scmp.eq.s32.totalorder %s21, 1
      %p88 = por %p86, %p87
      %p89 = scmp.ne.s32.totalorder %s78, %s79
      %p90 = scmp.eq.s32.totalorder %s21, 0
      %p91 = por %p89, %p90
      %p92 = scmp.ne.s32.totalorder %s78, %s79
      %p93 = scmp.eq.s32.totalorder %s22, 1
      %p94 = por %p92, %p93
      %p96 = scmp.ne.s32.totalorder %s79, %s95
      %p97 = scmp.eq.s32.totalorder %s22, 0
      %p98 = por %p96, %p97
      %s99 = ssub.s32 %s24, %s38
      %p100 = scmp.eq.s32.totalorder %s99, 0
      %s102 = sadd.s32 %s101, 1
      %s103 = scalar_select %p100, %s101, %s102
      %p106 = pneg %p100
      %p107 = scmp.eq.s32.totalorder %s16, 1
      %p108 = por %p106, %p107
      %p109 = scmp.ne.s32.totalorder %s101, %s104
      %p110 = scmp.eq.s32.totalorder %s16, 0
      %p111 = por %p109, %p110
      %p112 = scmp.ne.s32.totalorder %s101, %s104
      %p113 = scmp.eq.s32.totalorder %s21, 1
      %p114 = por %p112, %p113
      %p115 = scmp.ne.s32.totalorder %s104, %s105
      %p116 = scmp.eq.s32.totalorder %s21, 0
      %p117 = por %p115, %p116
      %p118 = scmp.ne.s32.totalorder %s104, %s105
      %p119 = scmp.eq.s32.totalorder %s22, 1
      %p120 = por %p118, %p119
      %p122 = scmp.ne.s32.totalorder %s105, %s121
      %p123 = scmp.eq.s32.totalorder %s22, 0
      %p124 = por %p122, %p123
      %s125 = ssub.s32 %s23, %s42
      %s126 = ssub.s32 %s24, %s38
      %s127 = sor.u32 %s125, %s126
      %p128 = scmp.eq.s32.totalorder %s127, 0
      %s130 = sadd.s32 %s129, 1
      %s131 = scalar_select %p128, %s129, %s130
      %p134 = pneg %p128
      %p135 = scmp.eq.s32.totalorder %s16, 1
      %p136 = por %p134, %p135
      %p137 = scmp.ne.s32.totalorder %s129, %s132
      %p138 = scmp.eq.s32.totalorder %s16, 0
      %p139 = por %p137, %p138
      %p140 = scmp.ne.s32.totalorder %s129, %s132
      %p141 = scmp.eq.s32.totalorder %s21, 1
      %p142 = por %p140, %p141
      %p143 = scmp.ne.s32.totalorder %s132, %s133
      %p144 = scmp.eq.s32.totalorder %s21, 0
      %p145 = por %p143, %p144
      %p146 = scmp.ne.s32.totalorder %s132, %s133
      %p147 = scmp.eq.s32.totalorder %s22, 1
      %p148 = por %p146, %p147
      %p150 = scmp.ne.s32.totalorder %s133, %s149
      %p151 = scmp.eq.s32.totalorder %s22, 0
      %p152 = por %p150, %p151
      %p153 = scmp.le.s32.totalorder 1, %s16
      %p154 = scmp.lt.s32.totalorder %s16, 3
      %p155 = pnand %p153, %p154
      %p156 = pneg %p155
      // Predicated region
      $region9: #{tpu_custom_call.1} parent=5 // pred_check
        _
      $region10: #{tpu_custom_call.1} parent=5 // pred_check_branch
        %158 = sbr.rel (%p155) target = $region12
      $region11: #{tpu_custom_call.1} parent=5 // pred_region
        %s159 = ssub.s32 %s16, 1
        // Predicated region
        $region13: #{tpu_custom_call.1} parent=11 // pred_check
          %p160 = pneg %p63
        $region14: #{tpu_custom_call.1} parent=11 // pred_check_branch
          %162 = sbr.rel (%p160) target = $region16
        $region15: #{tpu_custom_call.1} parent=11 // pred_region
          %s163 = smul.u32 2, %s28
          %s165 = ssub.s32 128, 128
          %166 = vsyncadd [#allocation4], %s165
          %s167 = smul.addr %s26, 2
          %s168 = sadd.s32 %s163, %s167
          %s169 = smul.addr %s168, 64
          %s170 = scalar_lea.hbm %s0, %s169
          %s172 = sshll.u32 [#allocation3], 4
          %s173 = int_to_ptr.vmem [resolvable:$true] %s172
          %175 = dma.hbm_to_vmem [thread:$0]  %s170, 128, %s173, [#allocation4]
        $region16: #{tpu_custom_call.1} parent=11 // pred_fallthru
          _
      $region12: #{tpu_custom_call.1} parent=5 // pred_fallthru
        _
      %p176 = scmp.lt.s32.totalorder %s16, 2
      // Predicated region
      $region17: #{tpu_custom_call.1} parent=5 // pred_check
        %p177 = pneg %p176
      $region18: #{tpu_custom_call.1} parent=5 // pred_check_branch
        %179 = sbr.rel (%p177) target = $region20
      $region19: #{tpu_custom_call.1} parent=5 // pred_region
        // Predicated region
        $region21: #{tpu_custom_call.1} parent=19 // pred_check
          %p180 = pneg %p85
        $region22: #{tpu_custom_call.1} parent=19 // pred_check_branch
          %182 = sbr.rel (%p180) target = $region24
        $region23: #{tpu_custom_call.1} parent=19 // pred_region
          %s183 = sand.u32 %s75, 1
          %s184 = scalar_lea.sflag [#allocation7], %s183
          %s185 = sand.u32 %s75, 1
          %s186 = smul.addr %s185, 128
          %s187 = scalar_lea.vmem [#allocation6], %s186
          %s188 = smul.u32 32, %s25
          %s190 = ssub.s32 2048, 2048
          %191 = vsyncadd %s184, %s190
          %s192 = smul.addr %s188, 2
          %s193 = sadd.s32 %s24, %s192
          %s194 = smul.addr %s193, 64
          %s195 = scalar_lea.hbm %s1, %s194
          %s196 = sshll.u32 %s187, 4
          %s197 = int_to_ptr.vmem [resolvable:$true] %s196
          %202 = dma.hbm_to_vmem [thread:$0]  %s195, 2048, %s197, %s184, 128, 64, 4
        $region24: #{tpu_custom_call.1} parent=19 // pred_fallthru
          _
        // Predicated region
        $region25: #{tpu_custom_call.1} parent=19 // pred_check
          %p203 = pneg %p111
        $region26: #{tpu_custom_call.1} parent=19 // pred_check_branch
          %205 = sbr.rel (%p203) target = $region28
        $region27: #{tpu_custom_call.1} parent=19 // pred_region
          %p206 = scmp.lt.s32.totalorder %s24, 1
          %s207 = scalar_select %p206, %s24, 1
          %s208 = scalar_lea.vmem %s2, %s207
        $region28: #{tpu_custom_call.1} parent=19 // pred_fallthru
          _
      $region20: #{tpu_custom_call.1} parent=5 // pred_fallthru
        _
      %p209 = scmp.le.s32.totalorder 1, %s16
      %p210 = scmp.lt.s32.totalorder %s16, 3
      %p211 = pnand %p209, %p210
      %p212 = pneg %p211
      // Predicated region
      $region29: #{tpu_custom_call.1} parent=5 // pred_check
        _
      $region30: #{tpu_custom_call.1} parent=5 // pred_check_branch
        %214 = sbr.rel (%p211) target = $region32
      $region31: #{tpu_custom_call.1} parent=5 // pred_region
        %s215 = ssub.s32 %s16, 1
        // Predicated region
        $region33: #{tpu_custom_call.1} parent=31 // pred_check
          %p216 = pneg %p63
        $region34: #{tpu_custom_call.1} parent=31 // pred_check_branch
          %218 = sbr.rel (%p216) target = $region36
        $region35: #{tpu_custom_call.1} parent=31 // pred_region
          %219 = dma.done [#allocation4], 128
        $region36: #{tpu_custom_call.1} parent=31 // pred_fallthru
          _
        %s220 = sand.u32 %s78, 1
        %s221 = scalar_lea.sflag [#allocation7], %s220
        %s222 = sand.u32 %s78, 1
        %s223 = smul.addr %s222, 128
        %s224 = scalar_lea.vmem [#allocation6], %s223
        // Predicated region
        $region37: #{tpu_custom_call.1} parent=31 // pred_check
          %p225 = pneg %p91
        $region38: #{tpu_custom_call.1} parent=31 // pred_check_branch
          %227 = sbr.rel (%p225) target = $region40
        $region39: #{tpu_custom_call.1} parent=31 // pred_region
          %228 = dma.done %s221, 2048
        $region40: #{tpu_custom_call.1} parent=31 // pred_fallthru
          _
        %p229 = pneg %p63
        %p230 = pneg %p60
        %s231 = sand.u32 %s78, 1
        %s232 = scalar_lea.sflag [#allocation7], %s231
        %s233 = sand.u32 %s78, 1
        %s234 = smul.addr %s233, 128
        %s235 = scalar_lea.vmem [#allocation6], %s234
        %p236 = pneg %p91
        %p237 = pneg %p88
        %p238 = scmp.lt.s32.totalorder %s27, 1
        %s239 = scalar_select %p238, %s27, 1
        %s240 = scalar_lea.vmem %s2, %s239
        %p241 = pneg %p117
        %p242 = pneg %p114
        %p243 = pneg %p145
        %p244 = pneg %p142
        %s245 = sand.u32 %s132, 1
        %s246 = scalar_lea.sflag [#allocation5], %s245
        %s247 = sand.u32 %s132, 1
        %s248 = smul.addr %s247, 8
        %s249 = scalar_lea.vmem [#allocation8], %s248
        %s250 = smul.u32 2, %s28
        %s251 = smul.u32 32, %s28
        %p252 = scmp.lt.s32.totalorder %s27, 1
        %s253 = scalar_select %p252, %s27, 1
        %s254 = scalar_lea.vmem %s2, %s253
        %v256 = vld [vmem:[#allocation3] sm:$0xff]
        %v257 = vld [vmem:[%s224] sm:$0xf]
        %v258 = vld [vmem:[%s224 + $0x4] sm:$0xf]
        %v259 = vld [vmem:[%s224 + $0x8] sm:$0xf]
        %v260 = vld [vmem:[%s224 + $0xc] sm:$0xf]
        %v261 = vld [vmem:[%s224 + $0x10] sm:$0xf]
        %v262 = vld [vmem:[%s224 + $0x14] sm:$0xf]
        %v263 = vld [vmem:[%s224 + $0x18] sm:$0xf]
        %v264 = vld [vmem:[%s224 + $0x1c] sm:$0xf]
        %v265 = vld [vmem:[%s224 + $0x20] sm:$0xf]
        %v266 = vld [vmem:[%s224 + $0x24] sm:$0xf]
        %v267 = vld [vmem:[%s224 + $0x28] sm:$0xf]
        %v268 = vld [vmem:[%s224 + $0x2c] sm:$0xf]
        %v269 = vld [vmem:[%s224 + $0x30] sm:$0xf]
        %v270 = vld [vmem:[%s224 + $0x34] sm:$0xf]
        %v271 = vld [vmem:[%s224 + $0x38] sm:$0xf]
        %v272 = vld [vmem:[%s224 + $0x3c] sm:$0xf]
        %v273 = vld [vmem:[%s224 + $0x40] sm:$0xf]
        %v274 = vld [vmem:[%s224 + $0x44] sm:$0xf]
        %v275 = vld [vmem:[%s224 + $0x48] sm:$0xf]
        %v276 = vld [vmem:[%s224 + $0x4c] sm:$0xf]
        %v277 = vld [vmem:[%s224 + $0x50] sm:$0xf]
        %v278 = vld [vmem:[%s224 + $0x54] sm:$0xf]
        %v279 = vld [vmem:[%s224 + $0x58] sm:$0xf]
        %v280 = vld [vmem:[%s224 + $0x5c] sm:$0xf]
        %v281 = vld [vmem:[%s224 + $0x60] sm:$0xf]
        %v282 = vld [vmem:[%s224 + $0x64] sm:$0xf]
        %v283 = vld [vmem:[%s224 + $0x68] sm:$0xf]
        %v284 = vld [vmem:[%s224 + $0x6c] sm:$0xf]
        %v285 = vld [vmem:[%s224 + $0x70] sm:$0xf]
        %v286 = vld [vmem:[%s224 + $0x74] sm:$0xf]
        %v287 = vld [vmem:[%s224 + $0x78] sm:$0xf]
        %v288 = vld [vmem:[%s224 + $0x7c] sm:$0xf]
        %v290 = vunpack.c.l.b16 %v256
        %v291 = vunpack.c.h.b16 %v256
        %v292 = vpack.c.b16 %v290, %v290
        %v293 = vpack.c.b16 %v291, %v291
        %v328 = vunpack.c.l.b16 %v257
        %v329 = vunpack.c.l.b16 %v258
        %v330 = vunpack.c.l.b16 %v259
        %v331 = vunpack.c.l.b16 %v260
        %v332 = vunpack.c.l.b16 %v261
        %v333 = vunpack.c.l.b16 %v262
        %v334 = vunpack.c.l.b16 %v263
        %v335 = vunpack.c.l.b16 %v264
        %v336 = vunpack.c.l.b16 %v265
        %v337 = vunpack.c.l.b16 %v266
        %v338 = vunpack.c.l.b16 %v267
        %v339 = vunpack.c.l.b16 %v268
        %v340 = vunpack.c.l.b16 %v269
        %v341 = vunpack.c.l.b16 %v270
        %v342 = vunpack.c.l.b16 %v271
        %v343 = vunpack.c.l.b16 %v272
        %v344 = vunpack.c.l.b16 %v273
        %v345 = vunpack.c.l.b16 %v274
        %v346 = vunpack.c.l.b16 %v275
        %v347 = vunpack.c.l.b16 %v276
        %v348 = vunpack.c.l.b16 %v277
        %v349 = vunpack.c.l.b16 %v278
        %v350 = vunpack.c.l.b16 %v279
        %v351 = vunpack.c.l.b16 %v280
        %v352 = vunpack.c.l.b16 %v281
        %v353 = vunpack.c.l.b16 %v282
        %v354 = vunpack.c.l.b16 %v283
        %v355 = vunpack.c.l.b16 %v284
        %v356 = vunpack.c.l.b16 %v285
        %v357 = vunpack.c.l.b16 %v286
        %v358 = vunpack.c.l.b16 %v287
        %v359 = vunpack.c.l.b16 %v288
        %v360 = vpack.c.b16 %v329, %v328
        %v361 = vpack.c.b16 %v331, %v330
        %v362 = vpack.c.b16 %v333, %v332
        %v363 = vpack.c.b16 %v335, %v334
        %v364 = vpack.c.b16 %v337, %v336
        %v365 = vpack.c.b16 %v339, %v338
        %v366 = vpack.c.b16 %v341, %v340
        %v367 = vpack.c.b16 %v343, %v342
        %v368 = vpack.c.b16 %v345, %v344
        %v369 = vpack.c.b16 %v347, %v346
        %v370 = vpack.c.b16 %v349, %v348
        %v371 = vpack.c.b16 %v351, %v350
        %v372 = vpack.c.b16 %v353, %v352
        %v373 = vpack.c.b16 %v355, %v354
        %v374 = vpack.c.b16 %v357, %v356
        %v375 = vpack.c.b16 %v359, %v358
        %392 = vmatprep.subr.bf16.mxu0 0
        %393 = vmatpush1.bf16.msra.mxu0 %v360
        %394 = vmatprep.subr.bf16.mxu0 0
        %395 = vmatpush1.bf16.msra.mxu0 %v361
        %396 = vmatprep.subr.bf16.mxu0 0
        %397 = vmatpush1.bf16.msra.mxu0 %v362
        %398 = vmatprep.subr.bf16.mxu0 0
        %399 = vmatpush1.bf16.msra.mxu0 %v363
        %400 = vmatprep.subr.bf16.mxu0 0
        %401 = vmatpush1.bf16.msra.mxu0 %v364
        %402 = vmatprep.subr.bf16.mxu0 0
        %403 = vmatpush1.bf16.msra.mxu0 %v365
        %404 = vmatprep.subr.bf16.mxu0 0
        %405 = vmatpush1.bf16.msra.mxu0 %v366
        %406 = vmatprep.subr.bf16.mxu0 0
        %407 = vmatpush1.bf16.msra.mxu0 %v367
        %408 = vmatprep.subr.bf16.mxu0 0
        %409 = vmatpush1.bf16.msra.mxu0 %v368
        %410 = vmatprep.subr.bf16.mxu0 0
        %411 = vmatpush1.bf16.msra.mxu0 %v369
        %412 = vmatprep.subr.bf16.mxu0 0
        %413 = vmatpush1.bf16.msra.mxu0 %v370
        %414 = vmatprep.subr.bf16.mxu0 0
        %415 = vmatpush1.bf16.msra.mxu0 %v371
        %416 = vmatprep.subr.bf16.mxu0 0
        %417 = vmatpush1.bf16.msra.mxu0 %v372
        %418 = vmatprep.subr.bf16.mxu0 0
        %419 = vmatpush1.bf16.msra.mxu0 %v373
        %420 = vmatprep.subr.bf16.mxu0 0
        %421 = vmatpush1.bf16.msra.mxu0 %v374
        %422 = vmatprep.subr.bf16.mxu0 0
        %423 = vmatpush1.bf16.msra.mxu0 %v375
        %424 = vmatprep.mubr.bf16.mxu0 %v293
        %425 = vmatmul.mubr.bf16.gmra.mrb[0].mxu0 %v292
        %v426 = vpop.f32.mrb[0].mxu0
        %v427 = vadd.f32 0.0, %v426
        %v428 = vpop.f32.mrb[0].mxu0
        %v429 = vpop.f32.mrb[0].mxu0
        %v430 = vpop.f32.mrb[0].mxu0
        %431 = vdwg.mxu0
        %p432 = scmp.eq.s32.totalorder %s28, 0
        // Predicated region
        $region41: #{tpu_custom_call.1} parent=31 // pred_check
          %p433 = pneg %p432
        $region42: #{tpu_custom_call.1} parent=31 // pred_check_branch
          %435 = sbr.rel (%p433) target = $region44
        $region43: #{tpu_custom_call.1} parent=31 // pred_region
          %436 = vst [vmem:[#allocation2] sm:$0xff] %v427
        $region44: #{tpu_custom_call.1} parent=31 // pred_fallthru
          _
        %p437 = scmp.gt.s32.totalorder %s28, 0
        // Predicated region
        $region45: #{tpu_custom_call.1} parent=31 // pred_check
          %p438 = pneg %p437
        $region46: #{tpu_custom_call.1} parent=31 // pred_check_branch
          %440 = sbr.rel (%p438) target = $region48
        $region47: #{tpu_custom_call.1} parent=31 // pred_region
          %v441 = vld [vmem:[#allocation2] sm:$0xff]
          %v442 = vadd.f32 %v441, %v427
          %443 = vst [vmem:[#allocation2] sm:$0xff] %v442
        $region48: #{tpu_custom_call.1} parent=31 // pred_fallthru
          _
        // Predicated region
        $region49: #{tpu_custom_call.1} parent=31 // pred_check
          %p444 = pneg %p432
        $region50: #{tpu_custom_call.1} parent=31 // pred_check_branch
          %446 = sbr.rel (%p444) target = $region52
        $region51: #{tpu_custom_call.1} parent=31 // pred_region
          %v447 = vld [vmem:[#allocation2] sm:$0xff]
          %v448 = vld [vmem:[%s254] sm:$0x1]
          %v450 = vlaneseq
          %v451 = vshrl.u32 %v450, 7
          %v452 = vsub.s32 0, %v451
          %v453 = vrot.slane %v448, %v452
          %v455 = vadd.f32 %v447, %v453
          %456 = vst [vmem:[%s249] sm:$0xff] %v455
        $region52: #{tpu_custom_call.1} parent=31 // pred_fallthru
          _
        %s457 = sand.u32 %s132, 1
        %s458 = scalar_lea.sflag [#allocation5], %s457
        %s459 = sand.u32 %s132, 1
        %s460 = smul.addr %s459, 8
        %s461 = scalar_lea.vmem [#allocation8], %s460
        // Predicated region
        $region53: #{tpu_custom_call.1} parent=31 // pred_check
          %p462 = pneg %p142
        $region54: #{tpu_custom_call.1} parent=31 // pred_check_branch
          %464 = sbr.rel (%p462) target = $region56
        $region55: #{tpu_custom_call.1} parent=31 // pred_region
          %s466 = ssub.s32 128, 128
          %467 = vsyncadd %s458, %s466
          %s468 = smul.addr %s26, 2
          %s469 = sadd.s32 %s27, %s468
          %s470 = smul.addr %s469, 128
          %s471 = scalar_lea.hbm %s3, %s470
          %s473 = sshll.u32 %s461, 4
          %s474 = int_to_ptr.vmem [resolvable:$true] %s473
          %476 = dma.vmem_to_hbm [thread:$0]  %s474, 128, %s471, %s458
        $region56: #{tpu_custom_call.1} parent=31 // pred_fallthru
          _
      $region32: #{tpu_custom_call.1} parent=5 // pred_fallthru
        _
      %p477 = scmp.le.s32.totalorder 2, %s16
      // Predicated region
      $region57: #{tpu_custom_call.1} parent=5 // pred_check
        %p478 = pneg %p477
      $region58: #{tpu_custom_call.1} parent=5 // pred_check_branch
        %480 = sbr.rel (%p478) target = $region60
      $region59: #{tpu_custom_call.1} parent=5 // pred_region
        %s481 = ssub.s32 %s16, 2
        // Predicated region
        $region61: #{tpu_custom_call.1} parent=59 // pred_check
          %p482 = pneg %p148
        $region62: #{tpu_custom_call.1} parent=59 // pred_check_branch
          %484 = sbr.rel (%p482) target = $region64
        $region63: #{tpu_custom_call.1} parent=59 // pred_region
          %s485 = sand.u32 %s133, 1
          %s486 = scalar_lea.sflag [#allocation5], %s485
          %s487 = sand.u32 %s133, 1
          %s488 = smul.addr %s487, 8
          %s489 = scalar_lea.vmem [#allocation8], %s488
          %490 = dma.done %s486, 128
        $region64: #{tpu_custom_call.1} parent=59 // pred_fallthru
          _
      $region60: #{tpu_custom_call.1} parent=5 // pred_fallthru
        _
    $region6: #{tpu_custom_call.1} parent=1 // loop_footer
      %s20 = sadd.s32 1, %s16
    $region7: #{tpu_custom_call.1} parent=1 // loop_footer_branch
      %15 = sbr.rel target = $region3
    $region8: #{tpu_custom_call.1} parent=1 // loop_exit
      _
    %491 = vsyncpa [#allocation4], 1
    %s492 = scalar_lea.sflag [#allocation4], 1
    %493 = vsyncpa %s492, 1
    %494 = vsyncpa [#allocation7], 1
    %s495 = scalar_lea.sflag [#allocation7], 1
    %496 = vsyncpa %s495, 1
    %497 = vsyncpa [#allocation5], 1
    %s498 = scalar_lea.sflag [#allocation5], 1
    %499 = vsyncpa %s498, 1

</llo_original>
